<compile_context>
chip_gen: v7x
topology: tpu7x:2x2x1
jax: 0.10.0
libtpu: 0.0.40
codegen_flags: <defaults>
</compile_context>

<pallas_src>
import functools

import jax
import jax.numpy as jnp
from jax.experimental import pallas as pl
from jax.experimental.pallas import tpu as pltpu

LANE = 128
SUBLANE = 8


def _round_up(x, m):
    return (x + m - 1) // m * m


def gen_bot_kernel(z_ref, w1_ref, b1_ref, w2_ref, b2_ref, w3_ref, b3_ref, o_ref):
    # --- layer 1: Linear (bf16 operands, f32 accumulation) + LeakyReLU(0.02) ---
    h = jnp.dot(z_ref[...], w1_ref[...], preferred_element_type=jnp.float32)
    h = h + b1_ref[...]
    h = jnp.maximum(h, 0.02 * h)          # LeakyReLU(0.02): single vmax
    # --- layer 2: Linear + LeakyReLU(0.02) ---
    h = jnp.dot(h.astype(jnp.bfloat16), w2_ref[...],
                preferred_element_type=jnp.float32)
    h = h + b2_ref[...]
    h = jnp.maximum(h, 0.02 * h)
    # --- layer 3: Linear + Tanh ---
    h = jnp.dot(h.astype(jnp.bfloat16), w3_ref[...],
                preferred_element_type=jnp.float32)
    h = h + b3_ref[...]
    o_ref[...] = jnp.tanh(h).astype(o_ref.dtype)   # bf16 writeback (half bytes)


def prepare_gen_bot_params(w1, b1, w2, b2, w3, b3):
    """One-time pad + bf16 cast of the parameters (hoisted out of the hot path)."""
    nz, nh = w1.shape
    no = w3.shape[1]
    nz_k = _round_up(nz, SUBLANE)    # contraction dim: sublane-aligned only
    nh_p = _round_up(nh, LANE)       # hidden / output dims: lane-dense
    no_p = _round_up(no, LANE)

    f32, bf16 = jnp.float32, jnp.bfloat16
    pad = lambda a, r, c: jnp.pad(a.astype(f32), ((0, r), (0, c)))

    return dict(
        w1=pad(w1, nz_k - nz, nh_p - nh).astype(bf16),
        b1=pad(jnp.reshape(b1, (1, nh)), 0, nh_p - nh),
        w2=pad(w2, nh_p - nh, nh_p - nh).astype(bf16),
        b2=pad(jnp.reshape(b2, (1, nh)), 0, nh_p - nh),
        w3=pad(w3, nh_p - nh, no_p - no).astype(bf16),
        b3=pad(jnp.reshape(b3, (1, no)), 0, no_p - no),
        nz=nz, nh=nh, no=no, nz_k=nz_k, nh_p=nh_p, no_p=no_p,
    )


def _choose_batch_tile(B, batch_tile, prefer_steps=2):
    # Largest multiple of 16 (bf16 sublane packing) <= batch_tile covering B,
    # but split so the grid has >= prefer_steps "parallel" steps when B allows:
    # v7x's 2 TensorCores are only used via the parallel batch axis; the extra
    # grid step costs ~0.35us on single-TC v5e/v6e.
    tb_max = max(16, (min(batch_tile, _round_up(B, 16)) // 16) * 16)
    if B > 16 * (prefer_steps - 1):
        tb_split = _round_up((B + prefer_steps - 1) // prefer_steps, 16)
        return min(tb_max, tb_split)
    return tb_max


def gen_bot_forward(z, params, *, batch_tile=512):
    """Runs the padded / tiled Pallas kernel and returns an f32 [B, no] array."""
    B, nz = z.shape
    assert nz == params["nz"]
    nz_k, nh_p, no_p, no = params["nz_k"], params["nh_p"], params["no_p"], params["no"]

    tb = _choose_batch_tile(B, batch_tile)
    B_p = _round_up(B, tb)
    nb = B_p // tb

    # Per-call work on z only: pad the batch (and feature to the 8-aligned
    # nz_k, usually a no-op) and cast the MXU operand to bf16 (halves z DMA).
    z_p = jnp.pad(z.astype(jnp.float32),
                  ((0, B_p - B), (0, nz_k - nz))).astype(jnp.bfloat16)

    # Weights / biases: whole-array blocks, constant index_map (DMA'd once and
    # VMEM-resident across grid steps).
    const = lambda shape: pl.BlockSpec(shape, lambda i: (0, 0))

    # Explicit VMEM budget with headroom (v5e scoped default is only 16 MiB),
    # accounting for default 2-deep buffering of every operand, capped at
    # v7x's 64 MiB physical VMEM.
    # TODO(synk): for very large nh (>~2048) tile w2 over a K "arbitrary" grid
    # axis instead of whole-weight residency (v7x 64 MiB VMEM).
    weight_bytes = (nz_k * nh_p + nh_p * nh_p + nh_p * no_p) * 2
    bias_bytes = (2 * nh_p + no_p) * 4
    io_bytes = tb * nz_k * 2 + tb * no_p * 2
    vmem_limit = min(64 << 20,
                     max(4 * (weight_bytes + bias_bytes + io_bytes) + (4 << 20),
                         16 << 20))

    out_p = pl.pallas_call(
        gen_bot_kernel,
        out_shape=jax.ShapeDtypeStruct((B_p, no_p), jnp.bfloat16),
        grid_spec=pltpu.PrefetchScalarGridSpec(
            num_scalar_prefetch=0,
            grid=(nb,),
            in_specs=[
                pl.BlockSpec((tb, nz_k), lambda i: (i, 0)),   # z (batch-tiled, narrow K)
                const((nz_k, nh_p)),                          # w1
                const((1, nh_p)),                             # b1
                const((nh_p, nh_p)),                          # w2
                const((1, nh_p)),                             # b2
                const((nh_p, no_p)),                          # w3
                const((1, no_p)),                             # b3
            ],
            out_specs=pl.BlockSpec((tb, no_p), lambda i: (i, 0)),
        ),
        compiler_params=pltpu.CompilerParams(
            # Parallel batch steps -> megacore sharding on v7x and software
            # pipelining of the z-load / out-store DMAs everywhere.
            dimension_semantics=("parallel",),
            vmem_limit_bytes=vmem_limit,
        ),
    )(z_p, params["w1"], params["b1"], params["w2"], params["b2"],
      params["w3"], params["b3"])

    return out_p[:B, :no].astype(jnp.float32)


def reference_forward_f32(z, w1, b1, w2, b2, w3, b3):
    leaky = lambda x: jnp.where(x > 0, x, 0.02 * x)
    h = leaky(z @ w1 + b1)
    h = leaky(h @ w2 + b2)
    return jnp.tanh(h @ w3 + b3)


def reference_forward_mixed(z, w1, b1, w2, b2, w3, b3):
    # Mirrors the kernel's bf16-operand / f32-accumulate / bf16-output recipe.
    bf16, f32 = jnp.bfloat16, jnp.float32
    leaky = lambda x: jnp.where(x > 0, x, 0.02 * x)
    h = leaky(jnp.dot(z.astype(bf16), w1.astype(bf16),
                      preferred_element_type=f32) + b1)
    h = leaky(jnp.dot(h.astype(bf16), w2.astype(bf16),
                      preferred_element_type=f32) + b2)
    out = jnp.tanh(jnp.dot(h.astype(bf16), w3.astype(bf16),
                           preferred_element_type=f32) + b3)
    return out.astype(bf16).astype(f32)


if __name__ == "__main__":
    # Small shapes consistent with the module.  B chosen so the batch-tile
    # heuristic yields 2 parallel grid steps of 256 rows each (v7x megacore
    # path + pipelining exercised, tile large enough to amortize step cost).
    B, NZ, NH, NO = 512, 16, 32, 8

    key = jax.random.PRNGKey(0)
    kz, k1, k2, k3, kb1, kb2, kb3 = jax.random.split(key, 7)

    z = jax.random.normal(kz, (B, NZ), dtype=jnp.float32)

    # Deterministic parameter init (uniform, roughly matching nn.Linear scale).
    def init_w(k, fan_in, shape):
        bound = 1.0 / jnp.sqrt(fan_in)
        return jax.random.uniform(k, shape, jnp.float32, -bound, bound)

    w1 = init_w(k1, NZ, (NZ, NH))
    b1 = init_w(kb1, NZ, (1, NH))
    w2 = init_w(k2, NH, (NH, NH))
    b2 = init_w(kb2, NH, (1, NH))
    w3 = init_w(k3, NH, (NH, NO))
    b3 = init_w(kb3, NH, (1, NO))

    # One-time parameter prep (pad + bf16 cast); the jitted hot path only
    # touches z and treats the prepared params as constants.
    params = prepare_gen_bot_params(w1, b1, w2, b2, w3, b3)
    fwd = jax.jit(functools.partial(gen_bot_forward, params=params))

    out = jax.block_until_ready(fwd(z))
    assert out.shape == (B, NO)

    # Check against a reference with the same mixed-precision recipe
    # (bf16 output rounding allows up to ~1 bf16 ulp of divergence).
    ref_mixed = reference_forward_mixed(z, w1, b1, w2, b2, w3, b3)
    assert jnp.allclose(out, ref_mixed, atol=1e-2, rtol=1e-2), (
        float(jnp.max(jnp.abs(out - ref_mixed))))

    # Loose check against the pure-f32 reference (bf16 operand + output rounding).
    ref_f32 = reference_forward_f32(z, w1, b1, w2, b2, w3, b3)
    assert jnp.allclose(out, ref_f32, atol=6e-2, rtol=6e-2), (
        float(jnp.max(jnp.abs(out - ref_f32))))

    print("KERNEL_OK")
</pallas_src>

<mosaic_0001>
module attributes {stable_mosaic.version = 11 : i64} {
  func.func @gen_bot_kernel(%arg0: i32, %arg1: memref<256x16xbf16, #tpu.memory_space<vmem>>, %arg2: memref<16x128xbf16, #tpu.memory_space<vmem>>, %arg3: memref<1x128xf32, #tpu.memory_space<vmem>>, %arg4: memref<128x128xbf16, #tpu.memory_space<vmem>>, %arg5: memref<1x128xf32, #tpu.memory_space<vmem>>, %arg6: memref<128x128xbf16, #tpu.memory_space<vmem>>, %arg7: memref<1x128xf32, #tpu.memory_space<vmem>>, %arg8: memref<256x128xbf16, #tpu.memory_space<vmem>>) attributes {dimension_semantics = [#tpu.dimension_semantics<parallel>], iteration_bounds = array<i64: 2>, scalar_prefetch = 0 : i64, scratch_operands = 0 : i64, tpu.core_type = #tpu.core_type<tc>, window_params = [{transform_indices = @transform_0, window_bounds = array<i64: 256, 16>}, {pipeline_mode = #tpu.pipeline_mode<synchronous>, transform_indices = @transform_1, window_bounds = array<i64: 16, 128>}, {pipeline_mode = #tpu.pipeline_mode<synchronous>, transform_indices = @transform_2, window_bounds = array<i64: 1, 128>}, {pipeline_mode = #tpu.pipeline_mode<synchronous>, transform_indices = @transform_3, window_bounds = array<i64: 128, 128>}, {pipeline_mode = #tpu.pipeline_mode<synchronous>, transform_indices = @transform_4, window_bounds = array<i64: 1, 128>}, {pipeline_mode = #tpu.pipeline_mode<synchronous>, transform_indices = @transform_5, window_bounds = array<i64: 128, 128>}, {pipeline_mode = #tpu.pipeline_mode<synchronous>, transform_indices = @transform_6, window_bounds = array<i64: 1, 128>}, {transform_indices = @transform_7, window_bounds = array<i64: 256, 128>}]} {
    %c0 = arith.constant 0 : index
    %c0_0 = arith.constant 0 : index
    %0 = vector.load %arg1[%c0, %c0_0] : memref<256x16xbf16, #tpu.memory_space<vmem>>, vector<256x16xbf16>
    %c0_1 = arith.constant 0 : index
    %c0_2 = arith.constant 0 : index
    %1 = vector.load %arg2[%c0_1, %c0_2] : memref<16x128xbf16, #tpu.memory_space<vmem>>, vector<16x128xbf16>
    %cst = arith.constant dense<0.000000e+00> : vector<256x128xf32>
    %2 = tpu.matmul %0, %1, %cst {dimension_numbers = #tpu.dot_dimension_numbers<[1], [0], [0], [1], [0, 0, 1, 1], [], []>} : vector<256x16xbf16>, vector<16x128xbf16>, vector<256x128xf32> -> vector<256x128xf32>
    %c0_3 = arith.constant 0 : index
    %c0_4 = arith.constant 0 : index
    %3 = vector.load %arg3[%c0_3, %c0_4] : memref<1x128xf32, #tpu.memory_space<vmem>>, vector<1x128xf32>
    %4 = vector.broadcast %3 : vector<1x128xf32> to vector<256x128xf32>
    %5 = arith.addf %2, %4 : vector<256x128xf32>
    %cst_5 = arith.constant 2.000000e-02 : f32
    %6 = vector.broadcast %cst_5 : f32 to vector<256x128xf32>
    %7 = arith.mulf %6, %5 : vector<256x128xf32>
    %8 = arith.maximumf %5, %7 : vector<256x128xf32>
    %9 = arith.truncf %8 : vector<256x128xf32> to vector<256x128xbf16>
    %c0_6 = arith.constant 0 : index
    %c0_7 = arith.constant 0 : index
    %10 = vector.load %arg4[%c0_6, %c0_7] : memref<128x128xbf16, #tpu.memory_space<vmem>>, vector<128x128xbf16>
    %cst_8 = arith.constant dense<0.000000e+00> : vector<256x128xf32>
    %11 = tpu.matmul %9, %10, %cst_8 {dimension_numbers = #tpu.dot_dimension_numbers<[1], [0], [0], [1], [0, 0, 1, 1], [], []>} : vector<256x128xbf16>, vector<128x128xbf16>, vector<256x128xf32> -> vector<256x128xf32>
    %c0_9 = arith.constant 0 : index
    %c0_10 = arith.constant 0 : index
    %12 = vector.load %arg5[%c0_9, %c0_10] : memref<1x128xf32, #tpu.memory_space<vmem>>, vector<1x128xf32>
    %13 = vector.broadcast %12 : vector<1x128xf32> to vector<256x128xf32>
    %14 = arith.addf %11, %13 : vector<256x128xf32>
    %cst_11 = arith.constant 2.000000e-02 : f32
    %15 = vector.broadcast %cst_11 : f32 to vector<256x128xf32>
    %16 = arith.mulf %15, %14 : vector<256x128xf32>
    %17 = arith.maximumf %14, %16 : vector<256x128xf32>
    %18 = arith.truncf %17 : vector<256x128xf32> to vector<256x128xbf16>
    %c0_12 = arith.constant 0 : index
    %c0_13 = arith.constant 0 : index
    %19 = vector.load %arg6[%c0_12, %c0_13] : memref<128x128xbf16, #tpu.memory_space<vmem>>, vector<128x128xbf16>
    %cst_14 = arith.constant dense<0.000000e+00> : vector<256x128xf32>
    %20 = tpu.matmul %18, %19, %cst_14 {dimension_numbers = #tpu.dot_dimension_numbers<[1], [0], [0], [1], [0, 0, 1, 1], [], []>} : vector<256x128xbf16>, vector<128x128xbf16>, vector<256x128xf32> -> vector<256x128xf32>
    %c0_15 = arith.constant 0 : index
    %c0_16 = arith.constant 0 : index
    %21 = vector.load %arg7[%c0_15, %c0_16] : memref<1x128xf32, #tpu.memory_space<vmem>>, vector<1x128xf32>
    %22 = vector.broadcast %21 : vector<1x128xf32> to vector<256x128xf32>
    %23 = arith.addf %20, %22 : vector<256x128xf32>
    %24 = math.tanh %23 : vector<256x128xf32>
    %25 = arith.truncf %24 : vector<256x128xf32> to vector<256x128xbf16>
    %c0_17 = arith.constant 0 : index
    %c0_18 = arith.constant 0 : index
    %26 = vector.load %arg8[%c0_17, %c0_18] : memref<256x128xbf16, #tpu.memory_space<vmem>>, vector<256x128xbf16>
    tpu.vector_store %arg8[%c0_17, %c0_18], %25 {strides = array<i32>} : memref<256x128xbf16, #tpu.memory_space<vmem>>, vector<256x128xbf16>,
    return
  }
  func.func @transform_0(%arg0: i32) -> (i32, i32) {
    %c0_i32 = arith.constant 0 : i32
    %c0_i32_0 = arith.constant 0 : i32
    return %arg0, %c0_i32 : i32, i32
  }
  func.func @transform_1(%arg0: i32) -> (i32, i32) {
    %c0_i32 = arith.constant 0 : i32
    %c0_i32_0 = arith.constant 0 : i32
    %c0_i32_1 = arith.constant 0 : i32
    return %c0_i32, %c0_i32_0 : i32, i32
  }
  func.func @transform_2(%arg0: i32) -> (i32, i32) {
    %c0_i32 = arith.constant 0 : i32
    %c0_i32_0 = arith.constant 0 : i32
    %c0_i32_1 = arith.constant 0 : i32
    return %c0_i32, %c0_i32_0 : i32, i32
  }
  func.func @transform_3(%arg0: i32) -> (i32, i32) {
    %c0_i32 = arith.constant 0 : i32
    %c0_i32_0 = arith.constant 0 : i32
    %c0_i32_1 = arith.constant 0 : i32
    return %c0_i32, %c0_i32_0 : i32, i32
  }
  func.func @transform_4(%arg0: i32) -> (i32, i32) {
    %c0_i32 = arith.constant 0 : i32
    %c0_i32_0 = arith.constant 0 : i32
    %c0_i32_1 = arith.constant 0 : i32
    return %c0_i32, %c0_i32_0 : i32, i32
  }
  func.func @transform_5(%arg0: i32) -> (i32, i32) {
    %c0_i32 = arith.constant 0 : i32
    %c0_i32_0 = arith.constant 0 : i32
    %c0_i32_1 = arith.constant 0 : i32
    return %c0_i32, %c0_i32_0 : i32, i32
  }
  func.func @transform_6(%arg0: i32) -> (i32, i32) {
    %c0_i32 = arith.constant 0 : i32
    %c0_i32_0 = arith.constant 0 : i32
    %c0_i32_1 = arith.constant 0 : i32
    return %c0_i32, %c0_i32_0 : i32, i32
  }
  func.func @transform_7(%arg0: i32) -> (i32, i32) {
    %c0_i32 = arith.constant 0 : i32
    %c0_i32_0 = arith.constant 0 : i32
    return %arg0, %c0_i32 : i32, i32
  }
}

</mosaic_0001>

<llo_original>
// kernel: gen_bot_forward.1
$region0: #{gen_bot_forward.1}
  #allocation0 [shape = 'u32[]', space=smem, size = 0x4, offset = 0x4, fixed_abs, tag = 'smem constant byte address 0x4 - core index']
  #allocation1 [shape = 'u32[144,128]{1,0:T(1,128)}', space=vmem, size = 0x12000, scoped, tag = 'internal scratch']
  %s0 = inlined_call_operand.vmem [shape: bf16[512,16], index: 0, kind: input, shape index: {}]
  %s1 = inlined_call_operand.vmem [shape: bf16[16,128], index: 1, kind: input, shape index: {}]
  %s2 = inlined_call_operand.vmem [shape: f32[1,128], index: 2, kind: input, shape index: {}]
  %s3 = inlined_call_operand.vmem [shape: bf16[128,128], index: 3, kind: input, shape index: {}]
  %s4 = inlined_call_operand.vmem [shape: f32[1,128], index: 4, kind: input, shape index: {}]
  %s5 = inlined_call_operand.vmem [shape: bf16[128,128], index: 5, kind: input, shape index: {}]
  %s6 = inlined_call_operand.vmem [shape: f32[1,128], index: 6, kind: input, shape index: {}]
  %s7 = inlined_call_operand.vmem [shape: bf16[512,128], index: 7, kind: output, shape index: {}]
  %s8 = sld [smem:[#allocation0]]
  $region61: #{gen_bot_forward.1} parent=0
    _
  %s10 = ssub.s32 1, %s8
  %s11 = scalar_select 0, %s10, %s8
  loop: start=0, step=1, limit=4
  $region2: #{gen_bot_forward.1} parent=0 // loop_pre_header
    _
  $region3: #{gen_bot_forward.1} parent=0 // loop_header
    %s13 = sphi 0, %s17
    %p14 = scmp.ge.s32.totalorder %s13, 4
    %s23 = sphi 0, %s25
    %s26 = sphi 0, %s23
    %s27 = sphi 0, %s26
    %s43 = sphi 0, %s27
    %s47 = sphi 0, %s47
    %s49 = sphi 0, %s47
    %s50 = sphi 0, %s49
    %s64 = sphi 0, %s50
    %s68 = sphi 0, %s68
    %s70 = sphi 0, %s68
    %s71 = sphi 0, %s70
    %s85 = sphi 0, %s71
    %s89 = sphi 0, %s89
    %s91 = sphi 0, %s89
    %s92 = sphi 0, %s91
    %s106 = sphi 0, %s92
    %s110 = sphi 0, %s110
    %s112 = sphi 0, %s110
    %s113 = sphi 0, %s112
    %s127 = sphi 0, %s113
    %s131 = sphi 0, %s131
    %s133 = sphi 0, %s131
    %s134 = sphi 0, %s133
    %s148 = sphi 0, %s134
    %s152 = sphi 0, %s152
    %s154 = sphi 0, %s152
    %s155 = sphi 0, %s154
    %s169 = sphi 0, %s155
    %s175 = sphi 0, %s177
    %s178 = sphi 0, %s175
    %s179 = sphi 0, %s178
    %s195 = sphi 0, %s179
  $region4: #{gen_bot_forward.1} parent=0 // loop_header_branch
    %16 = sbr.rel (%p14) target = $region8
  $region5: #{gen_bot_forward.1} parent=0 // loop_body
    %s18 = ssub.s32 %s13, 1
    %s19 = ssub.s32 %s13, 2
    %s20 = sadd.s32 %s13, 1
    %s21 = ssub.s32 %s13, %s20
    %p22 = scmp.eq.s32.totalorder %s21, 0
    %s24 = sadd.s32 %s23, 1
    %s25 = scalar_select %p22, %s23, %s24
    %p28 = pneg %p22
    %p29 = scmp.eq.s32.totalorder %s13, 1
    %p30 = por %p28, %p29
    %p31 = scmp.ne.s32.totalorder %s23, %s26
    %p32 = scmp.eq.s32.totalorder %s13, 0
    %p33 = por %p31, %p32
    %p34 = scmp.ne.s32.totalorder %s23, %s26
    %p35 = scmp.eq.s32.totalorder %s18, 1
    %p36 = por %p34, %p35
    %p37 = scmp.ne.s32.totalorder %s26, %s27
    %p38 = scmp.eq.s32.totalorder %s18, 0
    %p39 = por %p37, %p38
    %p40 = scmp.ne.s32.totalorder %s26, %s27
    %p41 = scmp.eq.s32.totalorder %s19, 1
    %p42 = por %p40, %p41
    %p44 = scmp.ne.s32.totalorder %s27, %s43
    %p45 = scmp.eq.s32.totalorder %s19, 0
    %p46 = por %p44, %p45
    %s48 = sadd.s32 %s47, 1
    %p51 = scmp.eq.s32.totalorder %s13, 1
    %p52 = scmp.ne.s32.totalorder %s47, %s49
    %p53 = scmp.eq.s32.totalorder %s13, 0
    %p54 = por %p52, %p53
    %p55 = scmp.ne.s32.totalorder %s47, %s49
    %p56 = scmp.eq.s32.totalorder %s18, 1
    %p57 = por %p55, %p56
    %p58 = scmp.ne.s32.totalorder %s49, %s50
    %p59 = scmp.eq.s32.totalorder %s18, 0
    %p60 = por %p58, %p59
    %p61 = scmp.ne.s32.totalorder %s49, %s50
    %p62 = scmp.eq.s32.totalorder %s19, 1
    %p63 = por %p61, %p62
    %p65 = scmp.ne.s32.totalorder %s50, %s64
    %p66 = scmp.eq.s32.totalorder %s19, 0
    %p67 = por %p65, %p66
    %s69 = sadd.s32 %s68, 1
    %p72 = scmp.eq.s32.totalorder %s13, 1
    %p73 = scmp.ne.s32.totalorder %s68, %s70
    %p74 = scmp.eq.s32.totalorder %s13, 0
    %p75 = por %p73, %p74
    %p76 = scmp.ne.s32.totalorder %s68, %s70
    %p77 = scmp.eq.s32.totalorder %s18, 1
    %p78 = por %p76, %p77
    %p79 = scmp.ne.s32.totalorder %s70, %s71
    %p80 = scmp.eq.s32.totalorder %s18, 0
    %p81 = por %p79, %p80
    %p82 = scmp.ne.s32.totalorder %s70, %s71
    %p83 = scmp.eq.s32.totalorder %s19, 1
    %p84 = por %p82, %p83
    %p86 = scmp.ne.s32.totalorder %s71, %s85
    %p87 = scmp.eq.s32.totalorder %s19, 0
    %p88 = por %p86, %p87
    %s90 = sadd.s32 %s89, 1
    %p93 = scmp.eq.s32.totalorder %s13, 1
    %p94 = scmp.ne.s32.totalorder %s89, %s91
    %p95 = scmp.eq.s32.totalorder %s13, 0
    %p96 = por %p94, %p95
    %p97 = scmp.ne.s32.totalorder %s89, %s91
    %p98 = scmp.eq.s32.totalorder %s18, 1
    %p99 = por %p97, %p98
    %p100 = scmp.ne.s32.totalorder %s91, %s92
    %p101 = scmp.eq.s32.totalorder %s18, 0
    %p102 = por %p100, %p101
    %p103 = scmp.ne.s32.totalorder %s91, %s92
    %p104 = scmp.eq.s32.totalorder %s19, 1
    %p105 = por %p103, %p104
    %p107 = scmp.ne.s32.totalorder %s92, %s106
    %p108 = scmp.eq.s32.totalorder %s19, 0
    %p109 = por %p107, %p108
    %s111 = sadd.s32 %s110, 1
    %p114 = scmp.eq.s32.totalorder %s13, 1
    %p115 = scmp.ne.s32.totalorder %s110, %s112
    %p116 = scmp.eq.s32.totalorder %s13, 0
    %p117 = por %p115, %p116
    %p118 = scmp.ne.s32.totalorder %s110, %s112
    %p119 = scmp.eq.s32.totalorder %s18, 1
    %p120 = por %p118, %p119
    %p121 = scmp.ne.s32.totalorder %s112, %s113
    %p122 = scmp.eq.s32.totalorder %s18, 0
    %p123 = por %p121, %p122
    %p124 = scmp.ne.s32.totalorder %s112, %s113
    %p125 = scmp.eq.s32.totalorder %s19, 1
    %p126 = por %p124, %p125
    %p128 = scmp.ne.s32.totalorder %s113, %s127
    %p129 = scmp.eq.s32.totalorder %s19, 0
    %p130 = por %p128, %p129
    %s132 = sadd.s32 %s131, 1
    %p135 = scmp.eq.s32.totalorder %s13, 1
    %p136 = scmp.ne.s32.totalorder %s131, %s133
    %p137 = scmp.eq.s32.totalorder %s13, 0
    %p138 = por %p136, %p137
    %p139 = scmp.ne.s32.totalorder %s131, %s133
    %p140 = scmp.eq.s32.totalorder %s18, 1
    %p141 = por %p139, %p140
    %p142 = scmp.ne.s32.totalorder %s133, %s134
    %p143 = scmp.eq.s32.totalorder %s18, 0
    %p144 = por %p142, %p143
    %p145 = scmp.ne.s32.totalorder %s133, %s134
    %p146 = scmp.eq.s32.totalorder %s19, 1
    %p147 = por %p145, %p146
    %p149 = scmp.ne.s32.totalorder %s134, %s148
    %p150 = scmp.eq.s32.totalorder %s19, 0
    %p151 = por %p149, %p150
    %s153 = sadd.s32 %s152, 1
    %p156 = scmp.eq.s32.totalorder %s13, 1
    %p157 = scmp.ne.s32.totalorder %s152, %s154
    %p158 = scmp.eq.s32.totalorder %s13, 0
    %p159 = por %p157, %p158
    %p160 = scmp.ne.s32.totalorder %s152, %s154
    %p161 = scmp.eq.s32.totalorder %s18, 1
    %p162 = por %p160, %p161
    %p163 = scmp.ne.s32.totalorder %s154, %s155
    %p164 = scmp.eq.s32.totalorder %s18, 0
    %p165 = por %p163, %p164
    %p166 = scmp.ne.s32.totalorder %s154, %s155
    %p167 = scmp.eq.s32.totalorder %s19, 1
    %p168 = por %p166, %p167
    %p170 = scmp.ne.s32.totalorder %s155, %s169
    %p171 = scmp.eq.s32.totalorder %s19, 0
    %p172 = por %p170, %p171
    %s173 = ssub.s32 %s13, %s20
    %p174 = scmp.eq.s32.totalorder %s173, 0
    %s176 = sadd.s32 %s175, 1
    %s177 = scalar_select %p174, %s175, %s176
    %p180 = pneg %p174
    %p181 = scmp.eq.s32.totalorder %s13, 1
    %p182 = por %p180, %p181
    %p183 = scmp.ne.s32.totalorder %s175, %s178
    %p184 = scmp.eq.s32.totalorder %s13, 0
    %p185 = por %p183, %p184
    %p186 = scmp.ne.s32.totalorder %s175, %s178
    %p187 = scmp.eq.s32.totalorder %s18, 1
    %p188 = por %p186, %p187
    %p189 = scmp.ne.s32.totalorder %s178, %s179
    %p190 = scmp.eq.s32.totalorder %s18, 0
    %p191 = por %p189, %p190
    %p192 = scmp.ne.s32.totalorder %s178, %s179
    %p193 = scmp.eq.s32.totalorder %s19, 1
    %p194 = por %p192, %p193
    %p196 = scmp.ne.s32.totalorder %s179, %s195
    %p197 = scmp.eq.s32.totalorder %s19, 0
    %p198 = por %p196, %p197
    %p199 = scmp.le.s32.totalorder 1, %s13
    %p200 = scmp.lt.s32.totalorder %s13, 3
    %p201 = pnand %p199, %p200
    %p202 = pneg %p201
    // Predicated region
    $region9: #{gen_bot_forward.1} parent=5 // pred_check
      _
    $region10: #{gen_bot_forward.1} parent=5 // pred_check_branch
      %204 = sbr.rel (%p201) target = $region12
    $region11: #{gen_bot_forward.1} parent=5 // pred_region
      %s205 = ssub.s32 %s13, 1
      // Predicated region
      $region13: #{gen_bot_forward.1} parent=11 // pred_check
        %p206 = pneg %p60
      $region14: #{gen_bot_forward.1} parent=11 // pred_check_branch
        %208 = sbr.rel (%p206) target = $region16
      $region15: #{gen_bot_forward.1} parent=11 // pred_region
        _
      $region16: #{gen_bot_forward.1} parent=11 // pred_fallthru
        _
      // Predicated region
      $region17: #{gen_bot_forward.1} parent=11 // pred_check
        %p209 = pneg %p81
      $region18: #{gen_bot_forward.1} parent=11 // pred_check_branch
        %211 = sbr.rel (%p209) target = $region20
      $region19: #{gen_bot_forward.1} parent=11 // pred_region
        _
      $region20: #{gen_bot_forward.1} parent=11 // pred_fallthru
        _
      // Predicated region
      $region21: #{gen_bot_forward.1} parent=11 // pred_check
        %p212 = pneg %p102
      $region22: #{gen_bot_forward.1} parent=11 // pred_check_branch
        %214 = sbr.rel (%p212) target = $region24
      $region23: #{gen_bot_forward.1} parent=11 // pred_region
        _
      $region24: #{gen_bot_forward.1} parent=11 // pred_fallthru
        _
      // Predicated region
      $region25: #{gen_bot_forward.1} parent=11 // pred_check
        %p215 = pneg %p123
      $region26: #{gen_bot_forward.1} parent=11 // pred_check_branch
        %217 = sbr.rel (%p215) target = $region28
      $region27: #{gen_bot_forward.1} parent=11 // pred_region
        _
      $region28: #{gen_bot_forward.1} parent=11 // pred_fallthru
        _
      // Predicated region
      $region29: #{gen_bot_forward.1} parent=11 // pred_check
        %p218 = pneg %p144
      $region30: #{gen_bot_forward.1} parent=11 // pred_check_branch
        %220 = sbr.rel (%p218) target = $region32
      $region31: #{gen_bot_forward.1} parent=11 // pred_region
        _
      $region32: #{gen_bot_forward.1} parent=11 // pred_fallthru
        _
      // Predicated region
      $region33: #{gen_bot_forward.1} parent=11 // pred_check
        %p221 = pneg %p165
      $region34: #{gen_bot_forward.1} parent=11 // pred_check_branch
        %223 = sbr.rel (%p221) target = $region36
      $region35: #{gen_bot_forward.1} parent=11 // pred_region
        _
      $region36: #{gen_bot_forward.1} parent=11 // pred_fallthru
        _
    $region12: #{gen_bot_forward.1} parent=5 // pred_fallthru
      _
    %p224 = scmp.lt.s32.totalorder %s13, 2
    // Predicated region
    $region37: #{gen_bot_forward.1} parent=5 // pred_check
      %p225 = pneg %p224
    $region38: #{gen_bot_forward.1} parent=5 // pred_check_branch
      %227 = sbr.rel (%p225) target = $region40
    $region39: #{gen_bot_forward.1} parent=5 // pred_region
      // Predicated region
      $region41: #{gen_bot_forward.1} parent=39 // pred_check
        %p228 = pneg %p33
      $region42: #{gen_bot_forward.1} parent=39 // pred_check_branch
        %230 = sbr.rel (%p228) target = $region44
      $region43: #{gen_bot_forward.1} parent=39 // pred_region
        %s231 = smul.u32 32, %s13
        %p232 = scmp.lt.s32.totalorder %s231, 63
        %s233 = scalar_select %p232, %s231, 63
        %s234 = smul.addr %s233, 4
        %s235 = scalar_lea.vmem %s0, %s234
        %s236 = smul.u32 32, %s13
      $region44: #{gen_bot_forward.1} parent=39 // pred_fallthru
        _
    $region40: #{gen_bot_forward.1} parent=5 // pred_fallthru
      _
    %p237 = scmp.le.s32.totalorder 1, %s13
    %p238 = scmp.lt.s32.totalorder %s13, 3
    %p239 = pnand %p237, %p238
    %p240 = pneg %p239
    // Predicated region
    $region45: #{gen_bot_forward.1} parent=5 // pred_check
      _
    $region46: #{gen_bot_forward.1} parent=5 // pred_check_branch
      %242 = sbr.rel (%p239) target = $region48
    $region47: #{gen_bot_forward.1} parent=5 // pred_region
      %s243 = ssub.s32 %s13, 1
      %s244 = smul.u32 32, %s18
      %p245 = scmp.lt.s32.totalorder %s244, 63
      %s246 = scalar_select %p245, %s244, 63
      %s247 = smul.addr %s246, 4
      %s248 = scalar_lea.vmem %s0, %s247
      %p249 = pneg %p39
      %p250 = pneg %p36
      %p251 = pneg %p60
      %p252 = pneg %p57
      %p253 = pneg %p81
      %p254 = pneg %p78
      %p255 = pneg %p102
      %p256 = pneg %p99
      %p257 = pneg %p123
      %p258 = pneg %p120
      %p259 = pneg %p144
      %p260 = pneg %p141
      %p261 = pneg %p165
      %p262 = pneg %p162
      %p263 = pneg %p191
      %p264 = pneg %p188
      %s265 = smul.u32 32, %s18
      %p266 = scmp.lt.s32.totalorder %s265, 63
      %s267 = scalar_select %p266, %s265, 63
      %s268 = smul.addr %s267, 4
      %s269 = scalar_lea.vmem %s7, %s268
      %s270 = smul.u32 32, %s18
      %p271 = scmp.lt.s32.totalorder %s270, 63
      %s272 = scalar_select %p271, %s270, 63
      %s273 = smul.addr %s272, 4
      %s274 = scalar_lea.vmem %s0, %s273
      %s275 = smul.u32 32, %s18
      %s276 = smul.u32 32, %s18
      %p277 = scmp.lt.s32.totalorder %s276, 63
      %s278 = scalar_select %p277, %s276, 63
      %s279 = smul.addr %s278, 4
      %s280 = scalar_lea.vmem %s7, %s279
      %s281 = smul.u32 32, %s18
      %v283 = vld [vmem:[%s274] sm:$0xf]
      %v284 = vld [vmem:[%s274 + $0x4] sm:$0xf]
      %v285 = vld [vmem:[%s274 + $0x8] sm:$0xf]
      %v286 = vld [vmem:[%s274 + $0xc] sm:$0xf]
      %v287 = vld [vmem:[%s274 + $0x10] sm:$0xf]
      %v288 = vld [vmem:[%s274 + $0x14] sm:$0xf]
      %v289 = vld [vmem:[%s274 + $0x18] sm:$0xf]
      %v290 = vld [vmem:[%s274 + $0x1c] sm:$0xf]
      %v291 = vld [vmem:[%s274 + $0x20] sm:$0xf]
      %v292 = vld [vmem:[%s274 + $0x24] sm:$0xf]
      %v293 = vld [vmem:[%s274 + $0x28] sm:$0xf]
      %v294 = vld [vmem:[%s274 + $0x2c] sm:$0xf]
      %v295 = vld [vmem:[%s274 + $0x30] sm:$0xf]
      %v296 = vld [vmem:[%s274 + $0x34] sm:$0xf]
      %v297 = vld [vmem:[%s274 + $0x38] sm:$0xf]
      %v298 = vld [vmem:[%s274 + $0x3c] sm:$0xf]
      %v299 = vld [vmem:[%s274 + $0x40] sm:$0xf]
      %v300 = vld [vmem:[%s274 + $0x44] sm:$0xf]
      %v301 = vld [vmem:[%s274 + $0x48] sm:$0xf]
      %v302 = vld [vmem:[%s274 + $0x4c] sm:$0xf]
      %v303 = vld [vmem:[%s274 + $0x50] sm:$0xf]
      %v304 = vld [vmem:[%s274 + $0x54] sm:$0xf]
      %v305 = vld [vmem:[%s274 + $0x58] sm:$0xf]
      %v306 = vld [vmem:[%s274 + $0x5c] sm:$0xf]
      %v307 = vld [vmem:[%s274 + $0x60] sm:$0xf]
      %v308 = vld [vmem:[%s274 + $0x64] sm:$0xf]
      %v309 = vld [vmem:[%s274 + $0x68] sm:$0xf]
      %v310 = vld [vmem:[%s274 + $0x6c] sm:$0xf]
      %v311 = vld [vmem:[%s274 + $0x70] sm:$0xf]
      %v312 = vld [vmem:[%s274 + $0x74] sm:$0xf]
      %v313 = vld [vmem:[%s274 + $0x78] sm:$0xf]
      %v314 = vld [vmem:[%s274 + $0x7c] sm:$0xf]
      %v315 = vld [vmem:[%s1] sm:$0xf]
      %v316 = vld [vmem:[%s1 + $0x4] sm:$0xf]
      %v317 = vld [vmem:[%s2] sm:$0x1]
      %v319 = vlaneseq
      %v320 = vshrl.u32 %v319, 7
      %v321 = vsub.s32 0, %v320
      %v322 = vrot.slane %v317, %v321
      %v356 = vunpack.c.l.b16 %v283
      %v357 = vunpack.c.l.b16 %v284
      %v358 = vunpack.c.l.b16 %v285
      %v359 = vunpack.c.l.b16 %v286
      %v360 = vunpack.c.l.b16 %v287
      %v361 = vunpack.c.l.b16 %v288
      %v362 = vunpack.c.l.b16 %v289
      %v363 = vunpack.c.l.b16 %v290
      %v364 = vunpack.c.l.b16 %v291
      %v365 = vunpack.c.l.b16 %v292
      %v366 = vunpack.c.l.b16 %v293
      %v367 = vunpack.c.l.b16 %v294
      %v368 = vunpack.c.l.b16 %v295
      %v369 = vunpack.c.l.b16 %v296
      %v370 = vunpack.c.l.b16 %v297
      %v371 = vunpack.c.l.b16 %v298
      %v372 = vunpack.c.l.b16 %v299
      %v373 = vunpack.c.l.b16 %v300
      %v374 = vunpack.c.l.b16 %v301
      %v375 = vunpack.c.l.b16 %v302
      %v376 = vunpack.c.l.b16 %v303
      %v377 = vunpack.c.l.b16 %v304
      %v378 = vunpack.c.l.b16 %v305
      %v379 = vunpack.c.l.b16 %v306
      %v380 = vunpack.c.l.b16 %v307
      %v381 = vunpack.c.l.b16 %v308
      %v382 = vunpack.c.l.b16 %v309
      %v383 = vunpack.c.l.b16 %v310
      %v384 = vunpack.c.l.b16 %v311
      %v385 = vunpack.c.l.b16 %v312
      %v386 = vunpack.c.l.b16 %v313
      %v387 = vunpack.c.l.b16 %v314
      %v388 = vpack.c.b16 %v357, %v356
      %v389 = vpack.c.b16 %v359, %v358
      %v390 = vpack.c.b16 %v361, %v360
      %v391 = vpack.c.b16 %v363, %v362
      %v392 = vpack.c.b16 %v365, %v364
      %v393 = vpack.c.b16 %v367, %v366
      %v394 = vpack.c.b16 %v369, %v368
      %v395 = vpack.c.b16 %v371, %v370
      %v396 = vpack.c.b16 %v373, %v372
      %v397 = vpack.c.b16 %v375, %v374
      %v398 = vpack.c.b16 %v377, %v376
      %v399 = vpack.c.b16 %v379, %v378
      %v400 = vpack.c.b16 %v381, %v380
      %v401 = vpack.c.b16 %v383, %v382
      %v402 = vpack.c.b16 %v385, %v384
      %v403 = vpack.c.b16 %v387, %v386
      %v406 = vunpack.c.l.b16 %v315
      %v407 = vunpack.c.l.b16 %v316
      %v408 = vpack.c.b16 %v407, %v406
      %vm410 = vcmask 130048
      %v412 = vsel %vm410, %v388, 0
      %v415 = vsel %vm410, %v389, 0
      %v418 = vsel %vm410, %v390, 0
      %v421 = vsel %vm410, %v391, 0
      %v424 = vsel %vm410, %v392, 0
      %v427 = vsel %vm410, %v393, 0
      %v430 = vsel %vm410, %v394, 0
      %v433 = vsel %vm410, %v395, 0
      %v436 = vsel %vm410, %v396, 0
      %v439 = vsel %vm410, %v397, 0
      %v442 = vsel %vm410, %v398, 0
      %v445 = vsel %vm410, %v399, 0
      %v448 = vsel %vm410, %v400, 0
      %v451 = vsel %vm410, %v401, 0
      %v454 = vsel %vm410, %v402, 0
      %v457 = vsel %vm410, %v403, 0
      %459 = vmatprep.subr.bf16.mxu0 0
      %460 = vmatpush1.bf16.msra.mxu0 %v408
      %461 = vmatprep.subr.bf16.mxu0 0
      %462 = vmatpush1.bf16.msra.mxu0 0
      %463 = vmatprep.subr.bf16.mxu0 0
      %464 = vmatpush1.bf16.msra.mxu0 0
      %465 = vmatprep.subr.bf16.mxu0 0
      %466 = vmatpush1.bf16.msra.mxu0 0
      %467 = vmatprep.subr.bf16.mxu0 0
      %468 = vmatpush1.bf16.msra.mxu0 0
      %469 = vmatprep.subr.bf16.mxu0 0
      %470 = vmatpush1.bf16.msra.mxu0 0
      %471 = vmatprep.subr.bf16.mxu0 0
      %472 = vmatpush1.bf16.msra.mxu0 0
      %473 = vmatprep.subr.bf16.mxu0 0
      %474 = vmatpush1.bf16.msra.mxu0 0
      %475 = vmatprep.subr.bf16.mxu0 0
      %476 = vmatpush1.bf16.msra.mxu0 0
      %477 = vmatprep.subr.bf16.mxu0 0
      %478 = vmatpush1.bf16.msra.mxu0 0
      %479 = vmatprep.subr.bf16.mxu0 0
      %480 = vmatpush1.bf16.msra.mxu0 0
      %481 = vmatprep.subr.bf16.mxu0 0
      %482 = vmatpush1.bf16.msra.mxu0 0
      %483 = vmatprep.subr.bf16.mxu0 0
      %484 = vmatpush1.bf16.msra.mxu0 0
      %485 = vmatprep.subr.bf16.mxu0 0
      %486 = vmatpush1.bf16.msra.mxu0 0
      %487 = vmatprep.subr.bf16.mxu0 0
      %488 = vmatpush1.bf16.msra.mxu0 0
      %489 = vmatprep.subr.bf16.mxu0 0
      %490 = vmatpush1.bf16.msra.mxu0 0
      %491 = vmatprep.mubr.bf16.mxu0 0
      %492 = vmatmul.mubr.bf16.gmra.mrb[0].mxu0 %v412
      %v493 = vpop.f32.mrb[0].mxu0
      %v494 = vadd.f32 %v322, %v493
      %v495 = vpop.f32.mrb[0].mxu0
      %v496 = vpop.f32.mrb[0].mxu0
      %v497 = vadd.f32 %v322, %v496
      %v498 = vpop.f32.mrb[0].mxu0
      %499 = vmatprep.mubr.bf16.mxu0 0
      %500 = vmatmul.mubr.bf16.gmra.mrb[0].mxu0 %v415
      %v501 = vpop.f32.mrb[0].mxu0
      %v502 = vadd.f32 %v322, %v501
      %v503 = vpop.f32.mrb[0].mxu0
      %v504 = vpop.f32.mrb[0].mxu0
      %v505 = vadd.f32 %v322, %v504
      %v506 = vpop.f32.mrb[0].mxu0
      %507 = vmatprep.mubr.bf16.mxu0 0
      %508 = vmatmul.mubr.bf16.gmra.mrb[0].mxu0 %v418
      %v509 = vpop.f32.mrb[0].mxu0
      %v510 = vadd.f32 %v322, %v509
      %v511 = vpop.f32.mrb[0].mxu0
      %v512 = vpop.f32.mrb[0].mxu0
      %v513 = vadd.f32 %v322, %v512
      %v514 = vpop.f32.mrb[0].mxu0
      %515 = vmatprep.mubr.bf16.mxu0 0
      %516 = vmatmul.mubr.bf16.gmra.mrb[0].mxu0 %v421
      %v517 = vpop.f32.mrb[0].mxu0
      %v518 = vadd.f32 %v322, %v517
      %v519 = vpop.f32.mrb[0].mxu0
      %v520 = vpop.f32.mrb[0].mxu0
      %v521 = vadd.f32 %v322, %v520
      %v522 = vpop.f32.mrb[0].mxu0
      %523 = vmatprep.mubr.bf16.mxu0 0
      %524 = vmatmul.mubr.bf16.gmra.mrb[0].mxu0 %v424
      %v525 = vpop.f32.mrb[0].mxu0
      %v526 = vadd.f32 %v322, %v525
      %v527 = vpop.f32.mrb[0].mxu0
      %v528 = vpop.f32.mrb[0].mxu0
      %v529 = vadd.f32 %v322, %v528
      %v530 = vpop.f32.mrb[0].mxu0
      %531 = vmatprep.mubr.bf16.mxu0 0
      %532 = vmatmul.mubr.bf16.gmra.mrb[0].mxu0 %v427
      %v533 = vpop.f32.mrb[0].mxu0
      %v534 = vadd.f32 %v322, %v533
      %v535 = vpop.f32.mrb[0].mxu0
      %v536 = vpop.f32.mrb[0].mxu0
      %v537 = vadd.f32 %v322, %v536
      %v538 = vpop.f32.mrb[0].mxu0
      %539 = vmatprep.mubr.bf16.mxu0 0
      %540 = vmatmul.mubr.bf16.gmra.mrb[0].mxu0 %v430
      %v541 = vpop.f32.mrb[0].mxu0
      %v542 = vadd.f32 %v322, %v541
      %v543 = vpop.f32.mrb[0].mxu0
      %v544 = vpop.f32.mrb[0].mxu0
      %v545 = vadd.f32 %v322, %v544
      %v546 = vpop.f32.mrb[0].mxu0
      %547 = vmatprep.mubr.bf16.mxu0 0
      %548 = vmatmul.mubr.bf16.gmra.mrb[0].mxu0 %v433
      %v549 = vpop.f32.mrb[0].mxu0
      %v550 = vadd.f32 %v322, %v549
      %v551 = vpop.f32.mrb[0].mxu0
      %v552 = vpop.f32.mrb[0].mxu0
      %v553 = vadd.f32 %v322, %v552
      %v554 = vpop.f32.mrb[0].mxu0
      %555 = vmatprep.mubr.bf16.mxu0 0
      %556 = vmatmul.mubr.bf16.gmra.mrb[0].mxu0 %v436
      %v557 = vpop.f32.mrb[0].mxu0
      %v558 = vadd.f32 %v322, %v557
      %v559 = vpop.f32.mrb[0].mxu0
      %v560 = vpop.f32.mrb[0].mxu0
      %v561 = vadd.f32 %v322, %v560
      %v562 = vpop.f32.mrb[0].mxu0
      %563 = vmatprep.mubr.bf16.mxu0 0
      %564 = vmatmul.mubr.bf16.gmra.mrb[0].mxu0 %v439
      %v565 = vpop.f32.mrb[0].mxu0
      %v566 = vadd.f32 %v322, %v565
      %v567 = vpop.f32.mrb[0].mxu0
      %v568 = vpop.f32.mrb[0].mxu0
      %v569 = vadd.f32 %v322, %v568
      %v570 = vpop.f32.mrb[0].mxu0
      %571 = vmatprep.mubr.bf16.mxu0 0
      %572 = vmatmul.mubr.bf16.gmra.mrb[0].mxu0 %v442
      %v573 = vpop.f32.mrb[0].mxu0
      %v574 = vadd.f32 %v322, %v573
      %v575 = vpop.f32.mrb[0].mxu0
      %v576 = vpop.f32.mrb[0].mxu0
      %v577 = vadd.f32 %v322, %v576
      %v578 = vpop.f32.mrb[0].mxu0
      %579 = vmatprep.mubr.bf16.mxu0 0
      %580 = vmatmul.mubr.bf16.gmra.mrb[0].mxu0 %v445
      %v581 = vpop.f32.mrb[0].mxu0
      %v582 = vadd.f32 %v322, %v581
      %v583 = vpop.f32.mrb[0].mxu0
      %v584 = vpop.f32.mrb[0].mxu0
      %v585 = vadd.f32 %v322, %v584
      %v586 = vpop.f32.mrb[0].mxu0
      %587 = vmatprep.mubr.bf16.mxu0 0
      %588 = vmatmul.mubr.bf16.gmra.mrb[0].mxu0 %v448
      %v589 = vpop.f32.mrb[0].mxu0
      %v590 = vadd.f32 %v322, %v589
      %v591 = vpop.f32.mrb[0].mxu0
      %v592 = vpop.f32.mrb[0].mxu0
      %v593 = vadd.f32 %v322, %v592
      %v594 = vpop.f32.mrb[0].mxu0
      %595 = vmatprep.mubr.bf16.mxu0 0
      %596 = vmatmul.mubr.bf16.gmra.mrb[0].mxu0 %v451
      %v597 = vpop.f32.mrb[0].mxu0
      %v598 = vadd.f32 %v322, %v597
      %v599 = vpop.f32.mrb[0].mxu0
      %v600 = vpop.f32.mrb[0].mxu0
      %v601 = vadd.f32 %v322, %v600
      %v602 = vpop.f32.mrb[0].mxu0
      %603 = vmatprep.mubr.bf16.mxu0 0
      %604 = vmatmul.mubr.bf16.gmra.mrb[0].mxu0 %v454
      %v605 = vpop.f32.mrb[0].mxu0
      %v606 = vadd.f32 %v322, %v605
      %v607 = vpop.f32.mrb[0].mxu0
      %v608 = vpop.f32.mrb[0].mxu0
      %v609 = vadd.f32 %v322, %v608
      %v610 = vpop.f32.mrb[0].mxu0
      %611 = vmatprep.mubr.bf16.mxu0 0
      %612 = vmatmul.mubr.bf16.gmra.mrb[0].mxu0 %v457
      %v613 = vpop.f32.mrb[0].mxu0
      %v614 = vadd.f32 %v322, %v613
      %v615 = vpop.f32.mrb[0].mxu0
      %v616 = vpop.f32.mrb[0].mxu0
      %v617 = vadd.f32 %v322, %v616
      %v618 = vpop.f32.mrb[0].mxu0
      %619 = vdwg.mxu0
      %v620 = vmul.f32 %v494, 0.02
      %v621 = vmul.f32 %v497, 0.02
      %v622 = vmul.f32 %v502, 0.02
      %v623 = vmul.f32 %v505, 0.02
      %v624 = vmul.f32 %v510, 0.02
      %v625 = vmul.f32 %v513, 0.02
      %v626 = vmul.f32 %v518, 0.02
      %v627 = vmul.f32 %v521, 0.02
      %v628 = vmul.f32 %v526, 0.02
      %v629 = vmul.f32 %v529, 0.02
      %v630 = vmul.f32 %v534, 0.02
      %v631 = vmul.f32 %v537, 0.02
      %v632 = vmul.f32 %v542, 0.02
      %v633 = vmul.f32 %v545, 0.02
      %v634 = vmul.f32 %v550, 0.02
      %v635 = vmul.f32 %v553, 0.02
      %v636 = vmul.f32 %v558, 0.02
      %v637 = vmul.f32 %v561, 0.02
      %v638 = vmul.f32 %v566, 0.02
      %v639 = vmul.f32 %v569, 0.02
      %v640 = vmul.f32 %v574, 0.02
      %v641 = vmul.f32 %v577, 0.02
      %v642 = vmul.f32 %v582, 0.02
      %v643 = vmul.f32 %v585, 0.02
      %v644 = vmul.f32 %v590, 0.02
      %v645 = vmul.f32 %v593, 0.02
      %v646 = vmul.f32 %v598, 0.02
      %v647 = vmul.f32 %v601, 0.02
      %v648 = vmul.f32 %v606, 0.02
      %v649 = vmul.f32 %v609, 0.02
      %v650 = vmul.f32 %v614, 0.02
      %v651 = vmul.f32 %v617, 0.02
      %v652 = vmax.f32 %v494, %v620
      %v653 = vmax.f32 %v497, %v621
      %v654 = vmax.f32 %v502, %v622
      %v655 = vmax.f32 %v505, %v623
      %v656 = vmax.f32 %v510, %v624
      %v657 = vmax.f32 %v513, %v625
      %v658 = vmax.f32 %v518, %v626
      %v659 = vmax.f32 %v521, %v627
      %v660 = vmax.f32 %v526, %v628
      %v661 = vmax.f32 %v529, %v629
      %v662 = vmax.f32 %v534, %v630
      %v663 = vmax.f32 %v537, %v631
      %v664 = vmax.f32 %v542, %v632
      %v665 = vmax.f32 %v545, %v633
      %v666 = vmax.f32 %v550, %v634
      %v667 = vmax.f32 %v553, %v635
      %v668 = vmax.f32 %v558, %v636
      %v669 = vmax.f32 %v561, %v637
      %v670 = vmax.f32 %v566, %v638
      %v671 = vmax.f32 %v569, %v639
      %v672 = vmax.f32 %v574, %v640
      %v673 = vmax.f32 %v577, %v641
      %v674 = vmax.f32 %v582, %v642
      %v675 = vmax.f32 %v585, %v643
      %v676 = vmax.f32 %v590, %v644
      %v677 = vmax.f32 %v593, %v645
      %v678 = vmax.f32 %v598, %v646
      %v679 = vmax.f32 %v601, %v647
      %v680 = vmax.f32 %v606, %v648
      %v681 = vmax.f32 %v609, %v649
      %v682 = vmax.f32 %v614, %v650
      %v683 = vmax.f32 %v617, %v651
      %v684 = vpack.c.bf16 %v653, %v652
      %v685 = vpack.c.bf16 %v655, %v654
      %v686 = vpack.c.bf16 %v657, %v656
      %v687 = vpack.c.bf16 %v659, %v658
      %v688 = vpack.c.bf16 %v661, %v660
      %v689 = vpack.c.bf16 %v663, %v662
      %v690 = vpack.c.bf16 %v665, %v664
      %v691 = vpack.c.bf16 %v667, %v666
      %v692 = vpack.c.bf16 %v669, %v668
      %v693 = vpack.c.bf16 %v671, %v670
      %v694 = vpack.c.bf16 %v673, %v672
      %v695 = vpack.c.bf16 %v675, %v674
      %v696 = vpack.c.bf16 %v677, %v676
      %v697 = vpack.c.bf16 %v679, %v678
      %v698 = vpack.c.bf16 %v681, %v680
      %v699 = vpack.c.bf16 %v683, %v682
      %v700 = vld [vmem:[%s3] sm:$0xf]
      %v701 = vld [vmem:[%s3 + $0x4] sm:$0xf]
      %v702 = vld [vmem:[%s3 + $0x8] sm:$0xf]
      %v703 = vld [vmem:[%s3 + $0xc] sm:$0xf]
      %v704 = vld [vmem:[%s3 + $0x10] sm:$0xf]
      %v705 = vld [vmem:[%s3 + $0x14] sm:$0xf]
      %v706 = vld [vmem:[%s3 + $0x18] sm:$0xf]
      %v707 = vld [vmem:[%s3 + $0x1c] sm:$0xf]
      %v708 = vld [vmem:[%s3 + $0x20] sm:$0xf]
      %v709 = vld [vmem:[%s3 + $0x24] sm:$0xf]
      %v710 = vld [vmem:[%s3 + $0x28] sm:$0xf]
      %v711 = vld [vmem:[%s3 + $0x2c] sm:$0xf]
      %v712 = vld [vmem:[%s3 + $0x30] sm:$0xf]
      %v713 = vld [vmem:[%s3 + $0x34] sm:$0xf]
      %v714 = vld [vmem:[%s3 + $0x38] sm:$0xf]
      %v715 = vld [vmem:[%s3 + $0x3c] sm:$0xf]
      %v716 = vld [vmem:[%s4] sm:$0x1]
      %v718 = vlaneseq
      %v719 = vshrl.u32 %v718, 7
      %v720 = vsub.s32 0, %v719
      %v721 = vrot.slane %v716, %v720
      %v739 = vunpack.c.l.b16 %v700
      %v740 = vunpack.c.l.b16 %v701
      %v741 = vunpack.c.l.b16 %v702
      %v742 = vunpack.c.l.b16 %v703
      %v743 = vunpack.c.l.b16 %v704
      %v744 = vunpack.c.l.b16 %v705
      %v745 = vunpack.c.l.b16 %v706
      %v746 = vunpack.c.l.b16 %v707
      %v747 = vunpack.c.l.b16 %v708
      %v748 = vunpack.c.l.b16 %v709
      %v749 = vunpack.c.l.b16 %v710
      %v750 = vunpack.c.l.b16 %v711
      %v751 = vunpack.c.l.b16 %v712
      %v752 = vunpack.c.l.b16 %v713
      %v753 = vunpack.c.l.b16 %v714
      %v754 = vunpack.c.l.b16 %v715
      %v755 = vpack.c.b16 %v740, %v739
      %v756 = vpack.c.b16 %v742, %v741
      %v757 = vpack.c.b16 %v744, %v743
      %v758 = vpack.c.b16 %v746, %v745
      %v759 = vpack.c.b16 %v748, %v747
      %v760 = vpack.c.b16 %v750, %v749
      %v761 = vpack.c.b16 %v752, %v751
      %v762 = vpack.c.b16 %v754, %v753
      %771 = vmatprep.subr.bf16.mxu0 0
      %772 = vmatpush1.bf16.msra.mxu0 %v755
      %773 = vmatprep.subr.bf16.mxu0 0
      %774 = vmatpush1.bf16.msra.mxu0 %v756
      %775 = vmatprep.subr.bf16.mxu0 0
      %776 = vmatpush1.bf16.msra.mxu0 %v757
      %777 = vmatprep.subr.bf16.mxu0 0
      %778 = vmatpush1.bf16.msra.mxu0 %v758
      %779 = vmatprep.subr.bf16.mxu0 0
      %780 = vmatpush1.bf16.msra.mxu0 %v759
      %781 = vmatprep.subr.bf16.mxu0 0
      %782 = vmatpush1.bf16.msra.mxu0 %v760
      %783 = vmatprep.subr.bf16.mxu0 0
      %784 = vmatpush1.bf16.msra.mxu0 %v761
      %785 = vmatprep.subr.bf16.mxu0 0
      %786 = vmatpush1.bf16.msra.mxu0 %v762
      %787 = vmatprep.subr.bf16.mxu0 0
      %788 = vmatpush1.bf16.msra.mxu0 0
      %789 = vmatprep.subr.bf16.mxu0 0
      %790 = vmatpush1.bf16.msra.mxu0 0
      %791 = vmatprep.subr.bf16.mxu0 0
      %792 = vmatpush1.bf16.msra.mxu0 0
      %793 = vmatprep.subr.bf16.mxu0 0
      %794 = vmatpush1.bf16.msra.mxu0 0
      %795 = vmatprep.subr.bf16.mxu0 0
      %796 = vmatpush1.bf16.msra.mxu0 0
      %797 = vmatprep.subr.bf16.mxu0 0
      %798 = vmatpush1.bf16.msra.mxu0 0
      %799 = vmatprep.subr.bf16.mxu0 0
      %800 = vmatpush1.bf16.msra.mxu0 0
      %801 = vmatprep.subr.bf16.mxu0 0
      %802 = vmatpush1.bf16.msra.mxu0 0
      %803 = vmatprep.mubr.bf16.mxu0 0
      %804 = vmatmul.mubr.bf16.gmra.mrb[0].mxu0 %v684
      %v805 = vpop.f32.mrb[0].mxu0
      %v806 = vadd.f32 %v721, %v805
      %v807 = vpop.f32.mrb[0].mxu0
      %v808 = vpop.f32.mrb[0].mxu0
      %v809 = vadd.f32 %v721, %v808
      %v810 = vpop.f32.mrb[0].mxu0
      %811 = vmatprep.mubr.bf16.mxu0 0
      %812 = vmatmul.mubr.bf16.gmra.mrb[0].mxu0 %v685
      %v813 = vpop.f32.mrb[0].mxu0
      %v814 = vadd.f32 %v721, %v813
      %v815 = vpop.f32.mrb[0].mxu0
      %v816 = vpop.f32.mrb[0].mxu0
      %v817 = vadd.f32 %v721, %v816
      %v818 = vpop.f32.mrb[0].mxu0
      %819 = vmatprep.mubr.bf16.mxu0 0
      %820 = vmatmul.mubr.bf16.gmra.mrb[0].mxu0 %v686
      %v821 = vpop.f32.mrb[0].mxu0
      %v822 = vadd.f32 %v721, %v821
      %v823 = vpop.f32.mrb[0].mxu0
      %v824 = vpop.f32.mrb[0].mxu0
      %v825 = vadd.f32 %v721, %v824
      %v826 = vpop.f32.mrb[0].mxu0
      %827 = vmatprep.mubr.bf16.mxu0 0
      %828 = vmatmul.mubr.bf16.gmra.mrb[0].mxu0 %v687
      %v829 = vpop.f32.mrb[0].mxu0
      %v830 = vadd.f32 %v721, %v829
      %v831 = vpop.f32.mrb[0].mxu0
      %v832 = vpop.f32.mrb[0].mxu0
      %v833 = vadd.f32 %v721, %v832
      %v834 = vpop.f32.mrb[0].mxu0
      %835 = vmatprep.mubr.bf16.mxu0 0
      %836 = vmatmul.mubr.bf16.gmra.mrb[0].mxu0 %v688
      %v837 = vpop.f32.mrb[0].mxu0
      %v838 = vadd.f32 %v721, %v837
      %v839 = vpop.f32.mrb[0].mxu0
      %v840 = vpop.f32.mrb[0].mxu0
      %v841 = vadd.f32 %v721, %v840
      %v842 = vpop.f32.mrb[0].mxu0
      %843 = vmatprep.mubr.bf16.mxu0 0
      %844 = vmatmul.mubr.bf16.gmra.mrb[0].mxu0 %v689
      %v845 = vpop.f32.mrb[0].mxu0
      %v846 = vadd.f32 %v721, %v845
      %v847 = vpop.f32.mrb[0].mxu0
      %v848 = vpop.f32.mrb[0].mxu0
      %v849 = vadd.f32 %v721, %v848
      %v850 = vpop.f32.mrb[0].mxu0
      %851 = vmatprep.mubr.bf16.mxu0 0
      %852 = vmatmul.mubr.bf16.gmra.mrb[0].mxu0 %v690
      %v853 = vpop.f32.mrb[0].mxu0
      %v854 = vadd.f32 %v721, %v853
      %v855 = vpop.f32.mrb[0].mxu0
      %v856 = vpop.f32.mrb[0].mxu0
      %v857 = vadd.f32 %v721, %v856
      %v858 = vpop.f32.mrb[0].mxu0
      %859 = vmatprep.mubr.bf16.mxu0 0
      %860 = vmatmul.mubr.bf16.gmra.mrb[0].mxu0 %v691
      %v861 = vpop.f32.mrb[0].mxu0
      %v862 = vadd.f32 %v721, %v861
      %v863 = vpop.f32.mrb[0].mxu0
      %v864 = vpop.f32.mrb[0].mxu0
      %v865 = vadd.f32 %v721, %v864
      %v866 = vpop.f32.mrb[0].mxu0
      %867 = vmatprep.mubr.bf16.mxu0 0
      %868 = vmatmul.mubr.bf16.gmra.mrb[0].mxu0 %v692
      %v869 = vpop.f32.mrb[0].mxu0
      %v870 = vadd.f32 %v721, %v869
      %v871 = vpop.f32.mrb[0].mxu0
      %v872 = vpop.f32.mrb[0].mxu0
      %v873 = vadd.f32 %v721, %v872
      %v874 = vpop.f32.mrb[0].mxu0
      %875 = vmatprep.mubr.bf16.mxu0 0
      %876 = vmatmul.mubr.bf16.gmra.mrb[0].mxu0 %v693
      %v877 = vpop.f32.mrb[0].mxu0
      %v878 = vadd.f32 %v721, %v877
      %v879 = vpop.f32.mrb[0].mxu0
      %v880 = vpop.f32.mrb[0].mxu0
      %v881 = vadd.f32 %v721, %v880
      %v882 = vpop.f32.mrb[0].mxu0
      %883 = vmatprep.mubr.bf16.mxu0 0
      %884 = vmatmul.mubr.bf16.gmra.mrb[0].mxu0 %v694
      %v885 = vpop.f32.mrb[0].mxu0
      %v886 = vadd.f32 %v721, %v885
      %v887 = vpop.f32.mrb[0].mxu0
      %v888 = vpop.f32.mrb[0].mxu0
      %v889 = vadd.f32 %v721, %v888
      %v890 = vpop.f32.mrb[0].mxu0
      %891 = vmatprep.mubr.bf16.mxu0 0
      %892 = vmatmul.mubr.bf16.gmra.mrb[0].mxu0 %v695
      %v893 = vpop.f32.mrb[0].mxu0
      %v894 = vadd.f32 %v721, %v893
      %v895 = vpop.f32.mrb[0].mxu0
      %v896 = vpop.f32.mrb[0].mxu0
      %v897 = vadd.f32 %v721, %v896
      %v898 = vpop.f32.mrb[0].mxu0
      %899 = vmatprep.mubr.bf16.mxu0 0
      %900 = vmatmul.mubr.bf16.gmra.mrb[0].mxu0 %v696
      %v901 = vpop.f32.mrb[0].mxu0
      %v902 = vadd.f32 %v721, %v901
      %v903 = vpop.f32.mrb[0].mxu0
      %v904 = vpop.f32.mrb[0].mxu0
      %v905 = vadd.f32 %v721, %v904
      %v906 = vpop.f32.mrb[0].mxu0
      %907 = vmatprep.mubr.bf16.mxu0 0
      %908 = vmatmul.mubr.bf16.gmra.mrb[0].mxu0 %v697
      %v909 = vpop.f32.mrb[0].mxu0
      %v910 = vadd.f32 %v721, %v909
      %v911 = vpop.f32.mrb[0].mxu0
      %v912 = vpop.f32.mrb[0].mxu0
      %v913 = vadd.f32 %v721, %v912
      %v914 = vpop.f32.mrb[0].mxu0
      %915 = vmatprep.mubr.bf16.mxu0 0
      %916 = vmatmul.mubr.bf16.gmra.mrb[0].mxu0 %v698
      %v917 = vpop.f32.mrb[0].mxu0
      %v918 = vadd.f32 %v721, %v917
      %v919 = vpop.f32.mrb[0].mxu0
      %v920 = vpop.f32.mrb[0].mxu0
      %v921 = vadd.f32 %v721, %v920
      %v922 = vpop.f32.mrb[0].mxu0
      %923 = vmatprep.mubr.bf16.mxu0 0
      %924 = vmatmul.mubr.bf16.gmra.mrb[0].mxu0 %v699
      %v925 = vpop.f32.mrb[0].mxu0
      %v926 = vadd.f32 %v721, %v925
      %v927 = vpop.f32.mrb[0].mxu0
      %v928 = vpop.f32.mrb[0].mxu0
      %v929 = vadd.f32 %v721, %v928
      %v930 = vpop.f32.mrb[0].mxu0
      %931 = vdwg.mxu0
      %v932 = vmul.f32 %v806, 0.02
      %v933 = vmul.f32 %v809, 0.02
      %v934 = vmul.f32 %v814, 0.02
      %v935 = vmul.f32 %v817, 0.02
      %v936 = vmul.f32 %v822, 0.02
      %v937 = vmul.f32 %v825, 0.02
      %v938 = vmul.f32 %v830, 0.02
      %v939 = vmul.f32 %v833, 0.02
      %v940 = vmul.f32 %v838, 0.02
      %v941 = vmul.f32 %v841, 0.02
      %v942 = vmul.f32 %v846, 0.02
      %v943 = vmul.f32 %v849, 0.02
      %v944 = vmul.f32 %v854, 0.02
      %v945 = vmul.f32 %v857, 0.02
      %v946 = vmul.f32 %v862, 0.02
      %v947 = vmul.f32 %v865, 0.02
      %v948 = vmul.f32 %v870, 0.02
      %v949 = vmul.f32 %v873, 0.02
      %v950 = vmul.f32 %v878, 0.02
      %v951 = vmul.f32 %v881, 0.02
      %v952 = vmul.f32 %v886, 0.02
      %v953 = vmul.f32 %v889, 0.02
      %v954 = vmul.f32 %v894, 0.02
      %v955 = vmul.f32 %v897, 0.02
      %v956 = vmul.f32 %v902, 0.02
      %v957 = vmul.f32 %v905, 0.02
      %v958 = vmul.f32 %v910, 0.02
      %v959 = vmul.f32 %v913, 0.02
      %v960 = vmul.f32 %v918, 0.02
      %v961 = vmul.f32 %v921, 0.02
      %v962 = vmul.f32 %v926, 0.02
      %v963 = vmul.f32 %v929, 0.02
      %v964 = vmax.f32 %v806, %v932
      %v965 = vmax.f32 %v809, %v933
      %v966 = vmax.f32 %v814, %v934
      %v967 = vmax.f32 %v817, %v935
      %v968 = vmax.f32 %v822, %v936
      %v969 = vmax.f32 %v825, %v937
      %v970 = vmax.f32 %v830, %v938
      %v971 = vmax.f32 %v833, %v939
      %v972 = vmax.f32 %v838, %v940
      %v973 = vmax.f32 %v841, %v941
      %v974 = vmax.f32 %v846, %v942
      %v975 = vmax.f32 %v849, %v943
      %v976 = vmax.f32 %v854, %v944
      %v977 = vmax.f32 %v857, %v945
      %v978 = vmax.f32 %v862, %v946
      %v979 = vmax.f32 %v865, %v947
      %v980 = vmax.f32 %v870, %v948
      %v981 = vmax.f32 %v873, %v949
      %v982 = vmax.f32 %v878, %v950
      %v983 = vmax.f32 %v881, %v951
      %v984 = vmax.f32 %v886, %v952
      %v985 = vmax.f32 %v889, %v953
      %v986 = vmax.f32 %v894, %v954
      %v987 = vmax.f32 %v897, %v955
      %v988 = vmax.f32 %v902, %v956
      %v989 = vmax.f32 %v905, %v957
      %v990 = vmax.f32 %v910, %v958
      %v991 = vmax.f32 %v913, %v959
      %v992 = vmax.f32 %v918, %v960
      %v993 = vmax.f32 %v921, %v961
      %v994 = vmax.f32 %v926, %v962
      %v995 = vmax.f32 %v929, %v963
      %v996 = vpack.c.bf16 %v965, %v964
      %v997 = vpack.c.bf16 %v967, %v966
      %v998 = vpack.c.bf16 %v969, %v968
      %v999 = vpack.c.bf16 %v971, %v970
      %v1000 = vpack.c.bf16 %v973, %v972
      %v1001 = vpack.c.bf16 %v975, %v974
      %v1002 = vpack.c.bf16 %v977, %v976
      %v1003 = vpack.c.bf16 %v979, %v978
      %v1004 = vpack.c.bf16 %v981, %v980
      %v1005 = vpack.c.bf16 %v983, %v982
      %v1006 = vpack.c.bf16 %v985, %v984
      %v1007 = vpack.c.bf16 %v987, %v986
      %v1008 = vpack.c.bf16 %v989, %v988
      %v1009 = vpack.c.bf16 %v991, %v990
      %v1010 = vpack.c.bf16 %v993, %v992
      %v1011 = vpack.c.bf16 %v995, %v994
      %v1012 = vld [vmem:[%s5] sm:$0xf]
      %v1013 = vld [vmem:[%s5 + $0x4] sm:$0xf]
      %v1014 = vld [vmem:[%s5 + $0x8] sm:$0xf]
      %v1015 = vld [vmem:[%s5 + $0xc] sm:$0xf]
      %v1016 = vld [vmem:[%s5 + $0x10] sm:$0xf]
      %v1017 = vld [vmem:[%s5 + $0x14] sm:$0xf]
      %v1018 = vld [vmem:[%s5 + $0x18] sm:$0xf]
      %v1019 = vld [vmem:[%s5 + $0x1c] sm:$0xf]
      %v1020 = vld [vmem:[%s5 + $0x20] sm:$0xf]
      %v1021 = vld [vmem:[%s5 + $0x24] sm:$0xf]
      %v1022 = vld [vmem:[%s5 + $0x28] sm:$0xf]
      %v1023 = vld [vmem:[%s5 + $0x2c] sm:$0xf]
      %v1024 = vld [vmem:[%s5 + $0x30] sm:$0xf]
      %v1025 = vld [vmem:[%s5 + $0x34] sm:$0xf]
      %v1026 = vld [vmem:[%s5 + $0x38] sm:$0xf]
      %v1027 = vld [vmem:[%s5 + $0x3c] sm:$0xf]
      %v1028 = vld [vmem:[%s6] sm:$0x1]
      %v1030 = vlaneseq
      %v1031 = vshrl.u32 %v1030, 7
      %v1032 = vsub.s32 0, %v1031
      %v1033 = vrot.slane %v1028, %v1032
      %v1051 = vunpack.c.l.b16 %v1012
      %v1052 = vunpack.c.l.b16 %v1013
      %v1053 = vunpack.c.l.b16 %v1014
      %v1054 = vunpack.c.l.b16 %v1015
      %v1055 = vunpack.c.l.b16 %v1016
      %v1056 = vunpack.c.l.b16 %v1017
      %v1057 = vunpack.c.l.b16 %v1018
      %v1058 = vunpack.c.l.b16 %v1019
      %v1059 = vunpack.c.l.b16 %v1020
      %v1060 = vunpack.c.l.b16 %v1021
      %v1061 = vunpack.c.l.b16 %v1022
      %v1062 = vunpack.c.l.b16 %v1023
      %v1063 = vunpack.c.l.b16 %v1024
      %v1064 = vunpack.c.l.b16 %v1025
      %v1065 = vunpack.c.l.b16 %v1026
      %v1066 = vunpack.c.l.b16 %v1027
      %v1067 = vpack.c.b16 %v1052, %v1051
      %v1068 = vpack.c.b16 %v1054, %v1053
      %v1069 = vpack.c.b16 %v1056, %v1055
      %v1070 = vpack.c.b16 %v1058, %v1057
      %v1071 = vpack.c.b16 %v1060, %v1059
      %v1072 = vpack.c.b16 %v1062, %v1061
      %v1073 = vpack.c.b16 %v1064, %v1063
      %v1074 = vpack.c.b16 %v1066, %v1065
      %1083 = vmatprep.subr.bf16.mxu0 0
      %1084 = vmatpush1.bf16.msra.mxu0 %v1067
      %1085 = vmatprep.subr.bf16.mxu0 0
      %1086 = vmatpush1.bf16.msra.mxu0 %v1068
      %1087 = vmatprep.subr.bf16.mxu0 0
      %1088 = vmatpush1.bf16.msra.mxu0 %v1069
      %1089 = vmatprep.subr.bf16.mxu0 0
      %1090 = vmatpush1.bf16.msra.mxu0 %v1070
      %1091 = vmatprep.subr.bf16.mxu0 0
      %1092 = vmatpush1.bf16.msra.mxu0 %v1071
      %1093 = vmatprep.subr.bf16.mxu0 0
      %1094 = vmatpush1.bf16.msra.mxu0 %v1072
      %1095 = vmatprep.subr.bf16.mxu0 0
      %1096 = vmatpush1.bf16.msra.mxu0 %v1073
      %1097 = vmatprep.subr.bf16.mxu0 0
      %1098 = vmatpush1.bf16.msra.mxu0 %v1074
      %1099 = vmatprep.subr.bf16.mxu0 0
      %1100 = vmatpush1.bf16.msra.mxu0 0
      %1101 = vmatprep.subr.bf16.mxu0 0
      %1102 = vmatpush1.bf16.msra.mxu0 0
      %1103 = vmatprep.subr.bf16.mxu0 0
      %1104 = vmatpush1.bf16.msra.mxu0 0
      %1105 = vmatprep.subr.bf16.mxu0 0
      %1106 = vmatpush1.bf16.msra.mxu0 0
      %1107 = vmatprep.subr.bf16.mxu0 0
      %1108 = vmatpush1.bf16.msra.mxu0 0
      %1109 = vmatprep.subr.bf16.mxu0 0
      %1110 = vmatpush1.bf16.msra.mxu0 0
      %1111 = vmatprep.subr.bf16.mxu0 0
      %1112 = vmatpush1.bf16.msra.mxu0 0
      %1113 = vmatprep.subr.bf16.mxu0 0
      %1114 = vmatpush1.bf16.msra.mxu0 0
      %1115 = vmatprep.mubr.bf16.mxu0 0
      %1116 = vmatmul.mubr.bf16.gmra.mrb[0].mxu0 %v996
      %v1117 = vpop.f32.mrb[0].mxu0
      %v1118 = vadd.f32 %v1033, %v1117
      %v1119 = vpop.f32.mrb[0].mxu0
      %v1120 = vpop.f32.mrb[0].mxu0
      %v1121 = vadd.f32 %v1033, %v1120
      %v1122 = vpop.f32.mrb[0].mxu0
      %1123 = vmatprep.mubr.bf16.mxu0 0
      %1124 = vmatmul.mubr.bf16.gmra.mrb[0].mxu0 %v997
      %v1125 = vpop.f32.mrb[0].mxu0
      %v1126 = vadd.f32 %v1033, %v1125
      %v1127 = vpop.f32.mrb[0].mxu0
      %v1128 = vpop.f32.mrb[0].mxu0
      %v1129 = vadd.f32 %v1033, %v1128
      %v1130 = vpop.f32.mrb[0].mxu0
      %1131 = vmatprep.mubr.bf16.mxu0 0
      %1132 = vmatmul.mubr.bf16.gmra.mrb[0].mxu0 %v998
      %v1133 = vpop.f32.mrb[0].mxu0
      %v1134 = vadd.f32 %v1033, %v1133
      %v1135 = vpop.f32.mrb[0].mxu0
      %v1136 = vpop.f32.mrb[0].mxu0
      %v1137 = vadd.f32 %v1033, %v1136
      %v1138 = vpop.f32.mrb[0].mxu0
      %1139 = vmatprep.mubr.bf16.mxu0 0
      %1140 = vmatmul.mubr.bf16.gmra.mrb[0].mxu0 %v999
      %v1141 = vpop.f32.mrb[0].mxu0
      %v1142 = vadd.f32 %v1033, %v1141
      %v1143 = vpop.f32.mrb[0].mxu0
      %v1144 = vpop.f32.mrb[0].mxu0
      %v1145 = vadd.f32 %v1033, %v1144
      %v1146 = vpop.f32.mrb[0].mxu0
      %1147 = vmatprep.mubr.bf16.mxu0 0
      %1148 = vmatmul.mubr.bf16.gmra.mrb[0].mxu0 %v1000
      %v1149 = vpop.f32.mrb[0].mxu0
      %v1150 = vadd.f32 %v1033, %v1149
      %v1151 = vpop.f32.mrb[0].mxu0
      %v1152 = vpop.f32.mrb[0].mxu0
      %v1153 = vadd.f32 %v1033, %v1152
      %v1154 = vpop.f32.mrb[0].mxu0
      %1155 = vmatprep.mubr.bf16.mxu0 0
      %1156 = vmatmul.mubr.bf16.gmra.mrb[0].mxu0 %v1001
      %v1157 = vpop.f32.mrb[0].mxu0
      %v1158 = vadd.f32 %v1033, %v1157
      %v1159 = vpop.f32.mrb[0].mxu0
      %v1160 = vpop.f32.mrb[0].mxu0
      %v1161 = vadd.f32 %v1033, %v1160
      %v1162 = vpop.f32.mrb[0].mxu0
      %1163 = vmatprep.mubr.bf16.mxu0 0
      %1164 = vmatmul.mubr.bf16.gmra.mrb[0].mxu0 %v1002
      %v1165 = vpop.f32.mrb[0].mxu0
      %v1166 = vadd.f32 %v1033, %v1165
      %v1167 = vpop.f32.mrb[0].mxu0
      %v1168 = vpop.f32.mrb[0].mxu0
      %v1169 = vadd.f32 %v1033, %v1168
      %v1170 = vpop.f32.mrb[0].mxu0
      %1171 = vmatprep.mubr.bf16.mxu0 0
      %1172 = vmatmul.mubr.bf16.gmra.mrb[0].mxu0 %v1003
      %v1173 = vpop.f32.mrb[0].mxu0
      %v1174 = vadd.f32 %v1033, %v1173
      %v1175 = vpop.f32.mrb[0].mxu0
      %v1176 = vpop.f32.mrb[0].mxu0
      %v1177 = vadd.f32 %v1033, %v1176
      %v1178 = vpop.f32.mrb[0].mxu0
      %1179 = vmatprep.mubr.bf16.mxu0 0
      %1180 = vmatmul.mubr.bf16.gmra.mrb[0].mxu0 %v1004
      %v1181 = vpop.f32.mrb[0].mxu0
      %v1182 = vadd.f32 %v1033, %v1181
      %v1183 = vpop.f32.mrb[0].mxu0
      %v1184 = vpop.f32.mrb[0].mxu0
      %v1185 = vadd.f32 %v1033, %v1184
      %v1186 = vpop.f32.mrb[0].mxu0
      %1187 = vmatprep.mubr.bf16.mxu0 0
      %1188 = vmatmul.mubr.bf16.gmra.mrb[0].mxu0 %v1005
      %v1189 = vpop.f32.mrb[0].mxu0
      %v1190 = vadd.f32 %v1033, %v1189
      %v1191 = vpop.f32.mrb[0].mxu0
      %v1192 = vpop.f32.mrb[0].mxu0
      %v1193 = vadd.f32 %v1033, %v1192
      %v1194 = vpop.f32.mrb[0].mxu0
      %1195 = vmatprep.mubr.bf16.mxu0 0
      %1196 = vmatmul.mubr.bf16.gmra.mrb[0].mxu0 %v1006
      %v1197 = vpop.f32.mrb[0].mxu0
      %v1198 = vadd.f32 %v1033, %v1197
      %v1199 = vpop.f32.mrb[0].mxu0
      %v1200 = vpop.f32.mrb[0].mxu0
      %v1201 = vadd.f32 %v1033, %v1200
      %v1202 = vpop.f32.mrb[0].mxu0
      %1203 = vmatprep.mubr.bf16.mxu0 0
      %1204 = vmatmul.mubr.bf16.gmra.mrb[0].mxu0 %v1007
      %v1205 = vpop.f32.mrb[0].mxu0
      %v1206 = vadd.f32 %v1033, %v1205
      %v1207 = vpop.f32.mrb[0].mxu0
      %v1208 = vpop.f32.mrb[0].mxu0
      %v1209 = vadd.f32 %v1033, %v1208
      %v1210 = vpop.f32.mrb[0].mxu0
      %1211 = vmatprep.mubr.bf16.mxu0 0
      %1212 = vmatmul.mubr.bf16.gmra.mrb[0].mxu0 %v1008
      %v1213 = vpop.f32.mrb[0].mxu0
      %v1214 = vadd.f32 %v1033, %v1213
      %v1215 = vpop.f32.mrb[0].mxu0
      %v1216 = vpop.f32.mrb[0].mxu0
      %v1217 = vadd.f32 %v1033, %v1216
      %v1218 = vpop.f32.mrb[0].mxu0
      %1219 = vmatprep.mubr.bf16.mxu0 0
      %1220 = vmatmul.mubr.bf16.gmra.mrb[0].mxu0 %v1009
      %v1221 = vpop.f32.mrb[0].mxu0
      %v1222 = vadd.f32 %v1033, %v1221
      %v1223 = vpop.f32.mrb[0].mxu0
      %v1224 = vpop.f32.mrb[0].mxu0
      %v1225 = vadd.f32 %v1033, %v1224
      %v1226 = vpop.f32.mrb[0].mxu0
      %1227 = vmatprep.mubr.bf16.mxu0 0
      %1228 = vmatmul.mubr.bf16.gmra.mrb[0].mxu0 %v1010
      %v1229 = vpop.f32.mrb[0].mxu0
      %v1230 = vadd.f32 %v1033, %v1229
      %v1231 = vpop.f32.mrb[0].mxu0
      %v1232 = vpop.f32.mrb[0].mxu0
      %v1233 = vadd.f32 %v1033, %v1232
      %v1234 = vpop.f32.mrb[0].mxu0
      %1235 = vmatprep.mubr.bf16.mxu0 0
      %1236 = vmatmul.mubr.bf16.gmra.mrb[0].mxu0 %v1011
      %v1237 = vpop.f32.mrb[0].mxu0
      %v1238 = vadd.f32 %v1033, %v1237
      %v1239 = vpop.f32.mrb[0].mxu0
      %v1240 = vpop.f32.mrb[0].mxu0
      %v1241 = vadd.f32 %v1033, %v1240
      %v1242 = vpop.f32.mrb[0].mxu0
      %1243 = vdwg.mxu0
      %v1244 = vtanh.pop %v1118
      %v1245 = vtanh.pop %v1121
      %v1246 = vtanh.pop %v1126
      %v1247 = vtanh.pop %v1129
      %v1248 = vtanh.pop %v1134
      %v1249 = vtanh.pop %v1137
      %v1250 = vtanh.pop %v1142
      %v1251 = vtanh.pop %v1145
      %v1252 = vtanh.pop %v1150
      %v1253 = vtanh.pop %v1153
      %v1254 = vtanh.pop %v1158
      %v1255 = vtanh.pop %v1161
      %v1256 = vtanh.pop %v1166
      %v1257 = vtanh.pop %v1169
      %v1258 = vtanh.pop %v1174
      %v1259 = vtanh.pop %v1177
      %v1260 = vtanh.pop %v1182
      %v1261 = vtanh.pop %v1185
      %v1262 = vtanh.pop %v1190
      %v1263 = vtanh.pop %v1193
      %v1264 = vtanh.pop %v1198
      %v1265 = vtanh.pop %v1201
      %v1266 = vtanh.pop %v1206
      %v1267 = vtanh.pop %v1209
      %v1268 = vtanh.pop %v1214
      %v1269 = vtanh.pop %v1217
      %v1270 = vtanh.pop %v1222
      %v1271 = vtanh.pop %v1225
      %v1272 = vtanh.pop %v1230
      %v1273 = vtanh.pop %v1233
      %v1274 = vtanh.pop %v1238
      %v1275 = vtanh.pop %v1241
      %v1276 = vpack.c.bf16 %v1245, %v1244
      %v1277 = vpack.c.bf16 %v1247, %v1246
      %v1278 = vpack.c.bf16 %v1249, %v1248
      %v1279 = vpack.c.bf16 %v1251, %v1250
      %v1280 = vpack.c.bf16 %v1253, %v1252
      %v1281 = vpack.c.bf16 %v1255, %v1254
      %v1282 = vpack.c.bf16 %v1257, %v1256
      %v1283 = vpack.c.bf16 %v1259, %v1258
      %v1284 = vpack.c.bf16 %v1261, %v1260
      %v1285 = vpack.c.bf16 %v1263, %v1262
      %v1286 = vpack.c.bf16 %v1265, %v1264
      %v1287 = vpack.c.bf16 %v1267, %v1266
      %v1288 = vpack.c.bf16 %v1269, %v1268
      %v1289 = vpack.c.bf16 %v1271, %v1270
      %v1290 = vpack.c.bf16 %v1273, %v1272
      %v1291 = vpack.c.bf16 %v1275, %v1274
      %v1308 = vunpack.c.l.b16 %v1276
      %v1309 = vunpack.c.h.b16 %v1276
      %v1310 = vunpack.c.l.b16 %v1277
      %v1311 = vunpack.c.h.b16 %v1277
      %v1312 = vunpack.c.l.b16 %v1278
      %v1313 = vunpack.c.h.b16 %v1278
      %v1314 = vunpack.c.l.b16 %v1279
      %v1315 = vunpack.c.h.b16 %v1279
      %v1316 = vunpack.c.l.b16 %v1280
      %v1317 = vunpack.c.h.b16 %v1280
      %v1318 = vunpack.c.l.b16 %v1281
      %v1319 = vunpack.c.h.b16 %v1281
      %v1320 = vunpack.c.l.b16 %v1282
      %v1321 = vunpack.c.h.b16 %v1282
      %v1322 = vunpack.c.l.b16 %v1283
      %v1323 = vunpack.c.h.b16 %v1283
      %v1324 = vunpack.c.l.b16 %v1284
      %v1325 = vunpack.c.h.b16 %v1284
      %v1326 = vunpack.c.l.b16 %v1285
      %v1327 = vunpack.c.h.b16 %v1285
      %v1328 = vunpack.c.l.b16 %v1286
      %v1329 = vunpack.c.h.b16 %v1286
      %v1330 = vunpack.c.l.b16 %v1287
      %v1331 = vunpack.c.h.b16 %v1287
      %v1332 = vunpack.c.l.b16 %v1288
      %v1333 = vunpack.c.h.b16 %v1288
      %v1334 = vunpack.c.l.b16 %v1289
      %v1335 = vunpack.c.h.b16 %v1289
      %v1336 = vunpack.c.l.b16 %v1290
      %v1337 = vunpack.c.h.b16 %v1290
      %v1338 = vunpack.c.l.b16 %v1291
      %v1339 = vunpack.c.h.b16 %v1291
      %v1340 = vpack.c.b16 %v1308, %v1308
      %v1341 = vpack.c.b16 %v1309, %v1309
      %v1342 = vpack.c.b16 %v1310, %v1310
      %v1343 = vpack.c.b16 %v1311, %v1311
      %v1344 = vpack.c.b16 %v1312, %v1312
      %v1345 = vpack.c.b16 %v1313, %v1313
      %v1346 = vpack.c.b16 %v1314, %v1314
      %v1347 = vpack.c.b16 %v1315, %v1315
      %v1348 = vpack.c.b16 %v1316, %v1316
      %v1349 = vpack.c.b16 %v1317, %v1317
      %v1350 = vpack.c.b16 %v1318, %v1318
      %v1351 = vpack.c.b16 %v1319, %v1319
      %v1352 = vpack.c.b16 %v1320, %v1320
      %v1353 = vpack.c.b16 %v1321, %v1321
      %v1354 = vpack.c.b16 %v1322, %v1322
      %v1355 = vpack.c.b16 %v1323, %v1323
      %v1356 = vpack.c.b16 %v1324, %v1324
      %v1357 = vpack.c.b16 %v1325, %v1325
      %v1358 = vpack.c.b16 %v1326, %v1326
      %v1359 = vpack.c.b16 %v1327, %v1327
      %v1360 = vpack.c.b16 %v1328, %v1328
      %v1361 = vpack.c.b16 %v1329, %v1329
      %v1362 = vpack.c.b16 %v1330, %v1330
      %v1363 = vpack.c.b16 %v1331, %v1331
      %v1364 = vpack.c.b16 %v1332, %v1332
      %v1365 = vpack.c.b16 %v1333, %v1333
      %v1366 = vpack.c.b16 %v1334, %v1334
      %v1367 = vpack.c.b16 %v1335, %v1335
      %v1368 = vpack.c.b16 %v1336, %v1336
      %v1369 = vpack.c.b16 %v1337, %v1337
      %v1370 = vpack.c.b16 %v1338, %v1338
      %v1371 = vpack.c.b16 %v1339, %v1339
      %1404 = vst [vmem:[%s280] sm:$0xf] %v1340
      %1405 = vst [vmem:[%s280 + $0x4] sm:$0xf] %v1341
      %1406 = vst [vmem:[%s280 + $0x8] sm:$0xf] %v1342
      %1407 = vst [vmem:[%s280 + $0xc] sm:$0xf] %v1343
      %1408 = vst [vmem:[%s280 + $0x10] sm:$0xf] %v1344
      %1409 = vst [vmem:[%s280 + $0x14] sm:$0xf] %v1345
      %1410 = vst [vmem:[%s280 + $0x18] sm:$0xf] %v1346
      %1411 = vst [vmem:[%s280 + $0x1c] sm:$0xf] %v1347
      %1412 = vst [vmem:[%s280 + $0x20] sm:$0xf] %v1348
      %1413 = vst [vmem:[%s280 + $0x24] sm:$0xf] %v1349
      %1414 = vst [vmem:[%s280 + $0x28] sm:$0xf] %v1350
      %1415 = vst [vmem:[%s280 + $0x2c] sm:$0xf] %v1351
      %1416 = vst [vmem:[%s280 + $0x30] sm:$0xf] %v1352
      %1417 = vst [vmem:[%s280 + $0x34] sm:$0xf] %v1353
      %1418 = vst [vmem:[%s280 + $0x38] sm:$0xf] %v1354
      %1419 = vst [vmem:[%s280 + $0x3c] sm:$0xf] %v1355
      %1420 = vst [vmem:[%s280 + $0x40] sm:$0xf] %v1356
      %1421 = vst [vmem:[%s280 + $0x44] sm:$0xf] %v1357
      %1422 = vst [vmem:[%s280 + $0x48] sm:$0xf] %v1358
      %1423 = vst [vmem:[%s280 + $0x4c] sm:$0xf] %v1359
      %1424 = vst [vmem:[%s280 + $0x50] sm:$0xf] %v1360
      %1425 = vst [vmem:[%s280 + $0x54] sm:$0xf] %v1361
      %1426 = vst [vmem:[%s280 + $0x58] sm:$0xf] %v1362
      %1427 = vst [vmem:[%s280 + $0x5c] sm:$0xf] %v1363
      %1428 = vst [vmem:[%s280 + $0x60] sm:$0xf] %v1364
      %1429 = vst [vmem:[%s280 + $0x64] sm:$0xf] %v1365
      %1430 = vst [vmem:[%s280 + $0x68] sm:$0xf] %v1366
      %1431 = vst [vmem:[%s280 + $0x6c] sm:$0xf] %v1367
      %1432 = vst [vmem:[%s280 + $0x70] sm:$0xf] %v1368
      %1433 = vst [vmem:[%s280 + $0x74] sm:$0xf] %v1369
      %1434 = vst [vmem:[%s280 + $0x78] sm:$0xf] %v1370
      %1435 = vst [vmem:[%s280 + $0x7c] sm:$0xf] %v1371
      %s1436 = smul.u32 32, %s18
      %p1437 = scmp.lt.s32.totalorder %s1436, 63
      %s1438 = scalar_select %p1437, %s1436, 63
      %s1439 = smul.addr %s1438, 4
      %s1440 = scalar_lea.vmem %s7, %s1439
      // Predicated region
      $region49: #{gen_bot_forward.1} parent=47 // pred_check
        %p1441 = pneg %p188
      $region50: #{gen_bot_forward.1} parent=47 // pred_check_branch
        %1443 = sbr.rel (%p1441) target = $region52
      $region51: #{gen_bot_forward.1} parent=47 // pred_region
        %s1444 = smul.u32 32, %s18
      $region52: #{gen_bot_forward.1} parent=47 // pred_fallthru
        _
    $region48: #{gen_bot_forward.1} parent=5 // pred_fallthru
      _
    %p1445 = scmp.le.s32.totalorder 2, %s13
    // Predicated region
    $region53: #{gen_bot_forward.1} parent=5 // pred_check
      %p1446 = pneg %p1445
    $region54: #{gen_bot_forward.1} parent=5 // pred_check_branch
      %1448 = sbr.rel (%p1446) target = $region56
    $region55: #{gen_bot_forward.1} parent=5 // pred_region
      %s1449 = ssub.s32 %s13, 2
      // Predicated region
      $region57: #{gen_bot_forward.1} parent=55 // pred_check
        %p1450 = pneg %p194
      $region58: #{gen_bot_forward.1} parent=55 // pred_check_branch
        %1452 = sbr.rel (%p1450) target = $region60
      $region59: #{gen_bot_forward.1} parent=55 // pred_region
        %s1453 = smul.u32 32, %s19
        %p1454 = scmp.lt.s32.totalorder %s1453, 63
        %s1455 = scalar_select %p1454, %s1453, 63
        %s1456 = smul.addr %s1455, 4
        %s1457 = scalar_lea.vmem %s7, %s1456
      $region60: #{gen_bot_forward.1} parent=55 // pred_fallthru
        _
    $region56: #{gen_bot_forward.1} parent=5 // pred_fallthru
      _
  $region6: #{gen_bot_forward.1} parent=0 // loop_footer
    %s17 = sadd.s32 1, %s13
  $region7: #{gen_bot_forward.1} parent=0 // loop_footer_branch
    %12 = sbr.rel target = $region3
  $region8: #{gen_bot_forward.1} parent=0 // loop_exit
    _

</llo_original>
